<compile_context>
chip_gen: v7x
topology: tpu7x:2x2x1
jax: 0.10.0
libtpu: 0.0.40
codegen_flags: <defaults>
</compile_context>

<pallas_src>
import functools

import jax
import jax.numpy as jnp
from jax import lax
from jax.experimental import pallas as pl
from jax.experimental.pallas import tpu as pltpu

EPS = 1e-5
_VMEM_LIMIT = 48 * 1024 * 1024   # bytes; < 64 MiB so it is also safe on v7x


# ------------------------- in-kernel helpers -------------------------

def _shift_lanes(x2d, s):
    """out[:, p] = x2d[:, (p + s) mod L] for a static int s (|s| < L)."""
    L = x2d.shape[-1]
    s = s % L
    if s == 0:
        return x2d
    return jnp.concatenate([x2d[:, s:], x2d[:, :s]], axis=-1)


def _conv3x3_flat(act, wmat, masks, w_img):
    """3x3 conv (padding=1, stride=1) of one image in (C, H*W) layout as ONE matmul.

    act:   (cin, hw) float32, spatial flattened into lanes
    wmat:  (cout, 9*cin) bf16, columns ordered (kh, kw, ci)
    masks: (9, 1, hw) float32 boundary-validity masks (tap order kh*3+kw)
    Returns a (cout, hw) float32 accumulator.
    """
    taps = []
    for kh in range(3):
        for kw in range(3):
            dh, dw = kh - 1, kw - 1
            t = _shift_lanes(act, dh * w_img + dw)
            if dh != 0 or dw != 0:
                t = t * masks[kh * 3 + kw]      # zero the padded ring / row wraps
            taps.append(t)
    im2col = jnp.concatenate(taps, axis=0).astype(jnp.bfloat16)   # (9*cin, hw)
    return jnp.dot(wmat, im2col, preferred_element_type=jnp.float32)


# ------------------------- Pallas kernels -------------------------

def conv1_stats_kernel(x_ref, w_ref, m_ref, z_ref, s_ref, q_ref, *, w_img):
    """conv1 over a group of images + per-group BN partial sums (sum, sum-of-sq)."""
    wmat = w_ref[...]
    masks = m_ref[...]
    s_ref[...] = jnp.zeros_like(s_ref)
    q_ref[...] = jnp.zeros_like(q_ref)

    @pl.loop(0, x_ref.shape[0])
    def _(b):
        acc = _conv3x3_flat(x_ref[b], wmat, masks, w_img)          # (cout, hw) f32
        z_ref[b] = acc.astype(z_ref.dtype)                          # lane-dense store
        s_ref[...] += jnp.sum(acc, axis=1, keepdims=True)
        q_ref[...] += jnp.sum(acc * acc, axis=1, keepdims=True)


def act_conv2_stats_kernel(z1_ref, mu_ref, w_ref, m_ref, z_ref, s_ref, q_ref, *, w_img):
    """(bn1 folded: subtract mean, relu) then conv2 + per-group BN2 partial sums.

    bn1's 1/sqrt(var+eps) scale is pre-folded into w_ref in the wrapper (it is > 0,
    so relu commutes with it), leaving only a per-channel subtract + relu here.
    """
    wmat = w_ref[...]
    masks = m_ref[...]
    mu = mu_ref[...]                                                # (c, 1) f32
    s_ref[...] = jnp.zeros_like(s_ref)
    q_ref[...] = jnp.zeros_like(q_ref)

    @pl.loop(0, z1_ref.shape[0])
    def _(b):
        act = jnp.maximum(z1_ref[b].astype(jnp.float32) - mu, 0.0)  # (c, hw)
        acc = _conv3x3_flat(act, wmat, masks, w_img)
        z_ref[b] = acc.astype(z_ref.dtype)
        s_ref[...] += jnp.sum(acc, axis=1, keepdims=True)
        q_ref[...] += jnp.sum(acc * acc, axis=1, keepdims=True)


def bn2_add_relu_kernel(z_ref, x_ref, a_ref, b_ref, o_ref):
    """bn2 (folded gamma/beta scale/shift) + residual add + relu, (C, H*W) layout."""
    y = z_ref[...].astype(jnp.float32) * a_ref[...] + b_ref[...] + x_ref[...]
    o_ref[...] = jnp.maximum(y, 0.0).astype(o_ref.dtype)


# ------------------------- wrapper helpers -------------------------

def _pick_group(n, cap=8):
    """Images per grid step: largest divisor of n (<= cap) keeping >= 2 grid steps."""
    best = 1
    for g in range(1, min(n, cap) + 1):
        if n % g == 0 and n // g >= 2:
            best = g
    return best


def _tap_masks(h, w):
    """(9, 1, h*w) float32 validity masks reproducing the conv zero padding."""
    row = jnp.repeat(jnp.arange(h), w)
    col = jnp.tile(jnp.arange(w), h)
    ms = []
    for kh in range(3):
        for kw in range(3):
            dh, dw = kh - 1, kw - 1
            ok = (row + dh >= 0) & (row + dh < h) & (col + dw >= 0) & (col + dw < w)
            ms.append(ok.astype(jnp.float32))
    return jnp.stack(ms).reshape(9, 1, h * w)


# ------------------------- JAX wrapper -------------------------

def basic_block_forward(x_nchw, w1_oihw, w2_oihw, gamma, beta):
    """Forward pass of BasicBlock (stride=1, downsample=None). NCHW in, NCHW out."""
    n, c_in, h, w = x_nchw.shape
    c_out = w1_oihw.shape[0]
    assert c_in == c_out, "residual add needs inplanes == planes (downsample=None)"
    hw = h * w

    cp = pltpu.CompilerParams(dimension_semantics=("parallel",),
                              vmem_limit_bytes=_VMEM_LIMIT)
    g = _pick_group(n)
    steps = n // g
    cnt = jnp.float32(n * hw)

    # NCHW stays NCHW: collapsing (H, W) -> H*W is a free reshape; spatial sits in
    # lanes for every kernel and no boundary transposes are needed.
    x_flat = x_nchw.reshape(n, c_in, hw).astype(jnp.float32)

    # Weights as (cout, 9*cin), columns ordered (kh, kw, ci) to match the im2col.
    w1m = jnp.transpose(w1_oihw, (0, 2, 3, 1)).reshape(c_out, 9 * c_in).astype(jnp.float32)
    w2m = jnp.transpose(w2_oihw, (0, 2, 3, 1)).reshape(c_out, 9 * c_out).astype(jnp.float32)
    masks = _tap_masks(h, w)

    conv_out_shape = (
        jax.ShapeDtypeStruct((n, c_out, hw), jnp.bfloat16),      # conv output
        jax.ShapeDtypeStruct((steps, c_out, 1), jnp.float32),    # per-step sum
        jax.ShapeDtypeStruct((steps, c_out, 1), jnp.float32),    # per-step sum-sq
    )
    conv_out_specs = (
        pl.BlockSpec((g, c_out, hw), lambda i: (i, 0, 0)),
        pl.BlockSpec((None, c_out, 1), lambda i: (i, 0, 0)),
        pl.BlockSpec((None, c_out, 1), lambda i: (i, 0, 0)),
    )
    mask_spec = pl.BlockSpec((9, 1, hw), lambda i: (0, 0, 0))

    # ---- stage 1: conv1 + BN1 partial stats (grid over image groups) ----
    z1, s1, q1 = pl.pallas_call(
        functools.partial(conv1_stats_kernel, w_img=w),
        grid=(steps,),
        in_specs=[
            pl.BlockSpec((g, c_in, hw), lambda i: (i, 0, 0)),
            pl.BlockSpec((c_out, 9 * c_in), lambda i: (0, 0)),
            mask_spec,
        ],
        out_specs=conv_out_specs,
        out_shape=conv_out_shape,
        compiler_params=cp,
    )(x_flat, w1m.astype(jnp.bfloat16), masks)

    # finalize BN1 (affine=False); clamp variance against E[x^2]-E[x]^2 cancellation.
    mean1 = s1.sum(axis=0) / cnt                                    # (c, 1)
    var1 = jnp.maximum(q1.sum(axis=0) / cnt - mean1 * mean1, 0.0)
    a1 = lax.rsqrt(var1 + EPS)                                      # (c, 1), > 0
    # relu(a1*(z-mean1)) == a1*relu(z-mean1): fold a1 into conv2's input channels.
    w2s = (w2m * jnp.tile(a1.reshape(-1), 9)[None, :]).astype(jnp.bfloat16)

    # ---- stage 2: (bn1-fold + relu) + conv2 + BN2 partial stats ----
    z2, s2, q2 = pl.pallas_call(
        functools.partial(act_conv2_stats_kernel, w_img=w),
        grid=(steps,),
        in_specs=[
            pl.BlockSpec((g, c_out, hw), lambda i: (i, 0, 0)),
            pl.BlockSpec((c_out, 1), lambda i: (0, 0)),
            pl.BlockSpec((c_out, 9 * c_out), lambda i: (0, 0)),
            mask_spec,
        ],
        out_specs=conv_out_specs,
        out_shape=conv_out_shape,
        compiler_params=cp,
    )(z1, mean1, w2s, masks)

    # finalize BN2 folded with its affine (gamma, beta)
    mean2 = s2.sum(axis=0) / cnt
    var2 = jnp.maximum(q2.sum(axis=0) / cnt - mean2 * mean2, 0.0)
    a2 = gamma.reshape(c_out, 1).astype(jnp.float32) * lax.rsqrt(var2 + EPS)
    b2 = beta.reshape(c_out, 1).astype(jnp.float32) - mean2 * a2

    # ---- stage 3: bn2 + residual + relu (lane-dense (C, H*W) blocks) ----
    out_flat = pl.pallas_call(
        bn2_add_relu_kernel,
        grid=(steps,),
        in_specs=[
            pl.BlockSpec((g, c_out, hw), lambda i: (i, 0, 0)),
            pl.BlockSpec((g, c_in, hw), lambda i: (i, 0, 0)),
            pl.BlockSpec((c_out, 1), lambda i: (0, 0)),
            pl.BlockSpec((c_out, 1), lambda i: (0, 0)),
        ],
        out_specs=pl.BlockSpec((g, c_out, hw), lambda i: (i, 0, 0)),
        out_shape=jax.ShapeDtypeStruct((n, c_out, hw), jnp.float32),
        compiler_params=cp,
    )(z2, x_flat, a2, b2)

    return out_flat.reshape(n, c_out, h, w)


# ------------------------- pure-JAX reference -------------------------

def basic_block_reference(x_nchw, w1, w2, gamma, beta):
    def conv(x, wt):
        return lax.conv_general_dilated(
            x, wt, window_strides=(1, 1), padding=((1, 1), (1, 1)),
            dimension_numbers=("NCHW", "OIHW", "NCHW"))

    def bn(x):
        mean = x.mean(axis=(0, 2, 3), keepdims=True)
        var = jnp.square(x - mean).mean(axis=(0, 2, 3), keepdims=True)
        return (x - mean) * lax.rsqrt(var + EPS)

    out = jnp.maximum(bn(conv(x_nchw, w1)), 0.0)
    out = bn(conv(out, w2))
    out = out * gamma.reshape(1, -1, 1, 1) + beta.reshape(1, -1, 1, 1)
    return jnp.maximum(out + x_nchw, 0.0)


# ------------------------- main -------------------------

if __name__ == "__main__":
    N, C, H, W = 2, 4, 16, 16       # inplanes = planes = 4, stride = 1
    key = jax.random.PRNGKey(0)
    kx, k1, k2, kg, kb = jax.random.split(key, 5)

    x = jax.random.normal(kx, (N, C, H, W), dtype=jnp.float32)
    # Conv weights in torch OIHW layout, deterministic init.
    w1 = jax.random.normal(k1, (C, C, 3, 3), dtype=jnp.float32) * 0.1
    w2 = jax.random.normal(k2, (C, C, 3, 3), dtype=jnp.float32) * 0.1
    # bn2 affine params (perturbed away from the torch defaults to exercise the path).
    gamma = 1.0 + 0.1 * jax.random.normal(kg, (C,), dtype=jnp.float32)
    beta = 0.1 * jax.random.normal(kb, (C,), dtype=jnp.float32)

    out = jax.block_until_ready(basic_block_forward(x, w1, w2, gamma, beta))
    ref = jax.block_until_ready(basic_block_reference(x, w1, w2, gamma, beta))

    assert out.shape == (N, C, H, W)
    err = float(jnp.max(jnp.abs(out - ref)))
    # bf16 MXU inputs and bf16 intermediate activations -> looser tolerance than f32.
    assert err < 5e-2, f"mismatch vs pure-JAX reference: max abs err {err}"
    print("KERNEL_OK")
</pallas_src>

<mosaic_0001>
module attributes {stable_mosaic.version = 11 : i64} {
  func.func @conv1_stats_kernel(%arg0: i32, %arg1: memref<1x4x256xf32, #tpu.memory_space<vmem>>, %arg2: memref<4x36xbf16, #tpu.memory_space<vmem>>, %arg3: memref<9x1x256xf32, #tpu.memory_space<vmem>>, %arg4: memref<1x4x256xbf16, #tpu.memory_space<vmem>>, %arg5: memref<1x4x1xf32, #tpu.memory_space<vmem>>, %arg6: memref<1x4x1xf32, #tpu.memory_space<vmem>>) attributes {dimension_semantics = [#tpu.dimension_semantics<parallel>], iteration_bounds = array<i64: 2>, scalar_prefetch = 0 : i64, scratch_operands = 0 : i64, tpu.core_type = #tpu.core_type<tc>, window_params = [{transform_indices = @transform_0, window_bounds = array<i64: 1, 4, 256>}, {pipeline_mode = #tpu.pipeline_mode<synchronous>, transform_indices = @transform_1, window_bounds = array<i64: 4, 36>}, {pipeline_mode = #tpu.pipeline_mode<synchronous>, transform_indices = @transform_2, window_bounds = array<i64: 9, 1, 256>}, {transform_indices = @transform_3, window_bounds = array<i64: 1, 4, 256>}, {transform_indices = @transform_4, window_bounds = array<i64: 1, 4, 1>}, {transform_indices = @transform_5, window_bounds = array<i64: 1, 4, 1>}]} {
    %c0 = arith.constant 0 : index
    %c0_0 = arith.constant 0 : index
    %0 = vector.load %arg2[%c0, %c0_0] : memref<4x36xbf16, #tpu.memory_space<vmem>>, vector<4x36xbf16>
    %c0_1 = arith.constant 0 : index
    %c0_2 = arith.constant 0 : index
    %c0_3 = arith.constant 0 : index
    %1 = vector.load %arg3[%c0_1, %c0_2, %c0_3] : memref<9x1x256xf32, #tpu.memory_space<vmem>>, vector<9x1x256xf32>
    %cst = arith.constant 0.000000e+00 : f32
    %2 = vector.broadcast %cst : f32 to vector<4x1xf32>
    %c0_4 = arith.constant 0 : index
    %c0_5 = arith.constant 0 : index
    %c0_6 = arith.constant 0 : index
    %3 = vector.load %arg5[%c0_4, %c0_5, %c0_6] : memref<1x4x1xf32, #tpu.memory_space<vmem>>, vector<1x4x1xf32>
    %4 = vector.shape_cast %3 : vector<1x4x1xf32> to vector<4x1xf32>
    %5 = vector.shape_cast %2 : vector<4x1xf32> to vector<1x4x1xf32>
    tpu.vector_store %arg5[%c0_4, %c0_5, %c0_6], %5 {strides = array<i32>} : memref<1x4x1xf32, #tpu.memory_space<vmem>>, vector<1x4x1xf32>,
    %cst_7 = arith.constant 0.000000e+00 : f32
    %6 = vector.broadcast %cst_7 : f32 to vector<4x1xf32>
    %c0_8 = arith.constant 0 : index
    %c0_9 = arith.constant 0 : index
    %c0_10 = arith.constant 0 : index
    %7 = vector.load %arg6[%c0_8, %c0_9, %c0_10] : memref<1x4x1xf32, #tpu.memory_space<vmem>>, vector<1x4x1xf32>
    %8 = vector.shape_cast %7 : vector<1x4x1xf32> to vector<4x1xf32>
    %9 = vector.shape_cast %6 : vector<4x1xf32> to vector<1x4x1xf32>
    tpu.vector_store %arg6[%c0_8, %c0_9, %c0_10], %9 {strides = array<i32>} : memref<1x4x1xf32, #tpu.memory_space<vmem>>, vector<1x4x1xf32>,
    %c0_i32 = arith.constant 0 : i32
    %c1_i32 = arith.constant 1 : i32
    %10 = arith.muli %c0_i32, %c1_i32 : i32
    %c0_i32_11 = arith.constant 0 : i32
    %11 = arith.addi %c0_i32_11, %10 : i32
    %12 = arith.index_cast %11 : i32 to index
    %c0_12 = arith.constant 0 : index
    %c0_13 = arith.constant 0 : index
    %13 = vector.load %arg1[%12, %c0_12, %c0_13] : memref<1x4x256xf32, #tpu.memory_space<vmem>>, vector<1x4x256xf32>
    %14 = vector.shape_cast %13 : vector<1x4x256xf32> to vector<4x256xf32>
    %15 = vector.extract_strided_slice %14 {offsets = [0, 239], sizes = [4, 17], strides = [1, 1]} : vector<4x256xf32> to vector<4x17xf32>
    %16 = vector.extract_strided_slice %14 {offsets = [0, 0], sizes = [4, 239], strides = [1, 1]} : vector<4x256xf32> to vector<4x239xf32>
    %17 = tpu.concatenate %15, %16 in 1 : vector<4x17xf32>, vector<4x239xf32> -> vector<4x256xf32>
    %18 = vector.extract_strided_slice %1 {offsets = [0, 0, 0], sizes = [1, 1, 256], strides = [1, 1, 1]} : vector<9x1x256xf32> to vector<1x1x256xf32>
    %19 = vector.shape_cast %18 : vector<1x1x256xf32> to vector<1x256xf32>
    %20 = vector.broadcast %19 : vector<1x256xf32> to vector<4x256xf32>
    %21 = arith.mulf %17, %20 : vector<4x256xf32>
    %22 = vector.extract_strided_slice %14 {offsets = [0, 240], sizes = [4, 16], strides = [1, 1]} : vector<4x256xf32> to vector<4x16xf32>
    %23 = vector.extract_strided_slice %14 {offsets = [0, 0], sizes = [4, 240], strides = [1, 1]} : vector<4x256xf32> to vector<4x240xf32>
    %24 = tpu.concatenate %22, %23 in 1 : vector<4x16xf32>, vector<4x240xf32> -> vector<4x256xf32>
    %25 = vector.extract_strided_slice %1 {offsets = [1, 0, 0], sizes = [1, 1, 256], strides = [1, 1, 1]} : vector<9x1x256xf32> to vector<1x1x256xf32>
    %26 = vector.shape_cast %25 : vector<1x1x256xf32> to vector<1x256xf32>
    %27 = vector.broadcast %26 : vector<1x256xf32> to vector<4x256xf32>
    %28 = arith.mulf %24, %27 : vector<4x256xf32>
    %29 = vector.extract_strided_slice %14 {offsets = [0, 241], sizes = [4, 15], strides = [1, 1]} : vector<4x256xf32> to vector<4x15xf32>
    %30 = vector.extract_strided_slice %14 {offsets = [0, 0], sizes = [4, 241], strides = [1, 1]} : vector<4x256xf32> to vector<4x241xf32>
    %31 = tpu.concatenate %29, %30 in 1 : vector<4x15xf32>, vector<4x241xf32> -> vector<4x256xf32>
    %32 = vector.extract_strided_slice %1 {offsets = [2, 0, 0], sizes = [1, 1, 256], strides = [1, 1, 1]} : vector<9x1x256xf32> to vector<1x1x256xf32>
    %33 = vector.shape_cast %32 : vector<1x1x256xf32> to vector<1x256xf32>
    %34 = vector.broadcast %33 : vector<1x256xf32> to vector<4x256xf32>
    %35 = arith.mulf %31, %34 : vector<4x256xf32>
    %36 = vector.extract_strided_slice %14 {offsets = [0, 255], sizes = [4, 1], strides = [1, 1]} : vector<4x256xf32> to vector<4x1xf32>
    %37 = vector.extract_strided_slice %14 {offsets = [0, 0], sizes = [4, 255], strides = [1, 1]} : vector<4x256xf32> to vector<4x255xf32>
    %38 = tpu.concatenate %36, %37 in 1 : vector<4x1xf32>, vector<4x255xf32> -> vector<4x256xf32>
    %39 = vector.extract_strided_slice %1 {offsets = [3, 0, 0], sizes = [1, 1, 256], strides = [1, 1, 1]} : vector<9x1x256xf32> to vector<1x1x256xf32>
    %40 = vector.shape_cast %39 : vector<1x1x256xf32> to vector<1x256xf32>
    %41 = vector.broadcast %40 : vector<1x256xf32> to vector<4x256xf32>
    %42 = arith.mulf %38, %41 : vector<4x256xf32>
    %43 = vector.extract_strided_slice %14 {offsets = [0, 1], sizes = [4, 255], strides = [1, 1]} : vector<4x256xf32> to vector<4x255xf32>
    %44 = vector.extract_strided_slice %14 {offsets = [0, 0], sizes = [4, 1], strides = [1, 1]} : vector<4x256xf32> to vector<4x1xf32>
    %45 = tpu.concatenate %43, %44 in 1 : vector<4x255xf32>, vector<4x1xf32> -> vector<4x256xf32>
    %46 = vector.extract_strided_slice %1 {offsets = [5, 0, 0], sizes = [1, 1, 256], strides = [1, 1, 1]} : vector<9x1x256xf32> to vector<1x1x256xf32>
    %47 = vector.shape_cast %46 : vector<1x1x256xf32> to vector<1x256xf32>
    %48 = vector.broadcast %47 : vector<1x256xf32> to vector<4x256xf32>
    %49 = arith.mulf %45, %48 : vector<4x256xf32>
    %50 = vector.extract_strided_slice %14 {offsets = [0, 15], sizes = [4, 241], strides = [1, 1]} : vector<4x256xf32> to vector<4x241xf32>
    %51 = vector.extract_strided_slice %14 {offsets = [0, 0], sizes = [4, 15], strides = [1, 1]} : vector<4x256xf32> to vector<4x15xf32>
    %52 = tpu.concatenate %50, %51 in 1 : vector<4x241xf32>, vector<4x15xf32> -> vector<4x256xf32>
    %53 = vector.extract_strided_slice %1 {offsets = [6, 0, 0], sizes = [1, 1, 256], strides = [1, 1, 1]} : vector<9x1x256xf32> to vector<1x1x256xf32>
    %54 = vector.shape_cast %53 : vector<1x1x256xf32> to vector<1x256xf32>
    %55 = vector.broadcast %54 : vector<1x256xf32> to vector<4x256xf32>
    %56 = arith.mulf %52, %55 : vector<4x256xf32>
    %57 = vector.extract_strided_slice %14 {offsets = [0, 16], sizes = [4, 240], strides = [1, 1]} : vector<4x256xf32> to vector<4x240xf32>
    %58 = vector.extract_strided_slice %14 {offsets = [0, 0], sizes = [4, 16], strides = [1, 1]} : vector<4x256xf32> to vector<4x16xf32>
    %59 = tpu.concatenate %57, %58 in 1 : vector<4x240xf32>, vector<4x16xf32> -> vector<4x256xf32>
    %60 = vector.extract_strided_slice %1 {offsets = [7, 0, 0], sizes = [1, 1, 256], strides = [1, 1, 1]} : vector<9x1x256xf32> to vector<1x1x256xf32>
    %61 = vector.shape_cast %60 : vector<1x1x256xf32> to vector<1x256xf32>
    %62 = vector.broadcast %61 : vector<1x256xf32> to vector<4x256xf32>
    %63 = arith.mulf %59, %62 : vector<4x256xf32>
    %64 = vector.extract_strided_slice %14 {offsets = [0, 17], sizes = [4, 239], strides = [1, 1]} : vector<4x256xf32> to vector<4x239xf32>
    %65 = vector.extract_strided_slice %14 {offsets = [0, 0], sizes = [4, 17], strides = [1, 1]} : vector<4x256xf32> to vector<4x17xf32>
    %66 = tpu.concatenate %64, %65 in 1 : vector<4x239xf32>, vector<4x17xf32> -> vector<4x256xf32>
    %67 = vector.extract_strided_slice %1 {offsets = [8, 0, 0], sizes = [1, 1, 256], strides = [1, 1, 1]} : vector<9x1x256xf32> to vector<1x1x256xf32>
    %68 = vector.shape_cast %67 : vector<1x1x256xf32> to vector<1x256xf32>
    %69 = vector.broadcast %68 : vector<1x256xf32> to vector<4x256xf32>
    %70 = arith.mulf %66, %69 : vector<4x256xf32>
    %71 = tpu.concatenate %21, %28, %35, %42, %14, %49, %56, %63, %70 in 0 : vector<4x256xf32>, vector<4x256xf32>, vector<4x256xf32>, vector<4x256xf32>, vector<4x256xf32>, vector<4x256xf32>, vector<4x256xf32>, vector<4x256xf32>, vector<4x256xf32> -> vector<36x256xf32>
    %72 = arith.truncf %71 : vector<36x256xf32> to vector<36x256xbf16>
    %cst_14 = arith.constant dense<0.000000e+00> : vector<4x256xf32>
    %73 = tpu.matmul %0, %72, %cst_14 {dimension_numbers = #tpu.dot_dimension_numbers<[1], [0], [0], [1], [0, 0, 1, 1], [], []>} : vector<4x36xbf16>, vector<36x256xbf16>, vector<4x256xf32> -> vector<4x256xf32>
    %74 = arith.truncf %73 : vector<4x256xf32> to vector<4x256xbf16>
    %75 = arith.index_cast %11 : i32 to index
    %c0_15 = arith.constant 0 : index
    %c0_16 = arith.constant 0 : index
    %76 = vector.load %arg4[%75, %c0_15, %c0_16] : memref<1x4x256xbf16, #tpu.memory_space<vmem>>, vector<1x4x256xbf16>
    %77 = vector.shape_cast %76 : vector<1x4x256xbf16> to vector<4x256xbf16>
    %78 = vector.shape_cast %74 : vector<4x256xbf16> to vector<1x4x256xbf16>
    tpu.vector_store %arg4[%75, %c0_15, %c0_16], %78 {strides = array<i32>} : memref<1x4x256xbf16, #tpu.memory_space<vmem>>, vector<1x4x256xbf16>,
    %c0_17 = arith.constant 0 : index
    %c0_18 = arith.constant 0 : index
    %c0_19 = arith.constant 0 : index
    %79 = vector.load %arg5[%c0_17, %c0_18, %c0_19] : memref<1x4x1xf32, #tpu.memory_space<vmem>>, vector<1x4x1xf32>
    %80 = vector.shape_cast %79 : vector<1x4x1xf32> to vector<4x1xf32>
    %cst_20 = arith.constant dense<0.000000e+00> : vector<4xf32>
    %81 = vector.multi_reduction <add>, %73, %cst_20 [1] : vector<4x256xf32> to vector<4xf32>
    %82 = vector.shape_cast %81 : vector<4xf32> to vector<4x1xf32>
    %83 = arith.addf %80, %82 : vector<4x1xf32>
    %c0_21 = arith.constant 0 : index
    %c0_22 = arith.constant 0 : index
    %c0_23 = arith.constant 0 : index
    %84 = vector.load %arg5[%c0_21, %c0_22, %c0_23] : memref<1x4x1xf32, #tpu.memory_space<vmem>>, vector<1x4x1xf32>
    %85 = vector.shape_cast %84 : vector<1x4x1xf32> to vector<4x1xf32>
    %86 = vector.shape_cast %83 : vector<4x1xf32> to vector<1x4x1xf32>
    tpu.vector_store %arg5[%c0_21, %c0_22, %c0_23], %86 {strides = array<i32>} : memref<1x4x1xf32, #tpu.memory_space<vmem>>, vector<1x4x1xf32>,
    %c0_24 = arith.constant 0 : index
    %c0_25 = arith.constant 0 : index
    %c0_26 = arith.constant 0 : index
    %87 = vector.load %arg6[%c0_24, %c0_25, %c0_26] : memref<1x4x1xf32, #tpu.memory_space<vmem>>, vector<1x4x1xf32>
    %88 = vector.shape_cast %87 : vector<1x4x1xf32> to vector<4x1xf32>
    %89 = arith.mulf %73, %73 : vector<4x256xf32>
    %cst_27 = arith.constant dense<0.000000e+00> : vector<4xf32>
    %90 = vector.multi_reduction <add>, %89, %cst_27 [1] : vector<4x256xf32> to vector<4xf32>
    %91 = vector.shape_cast %90 : vector<4xf32> to vector<4x1xf32>
    %92 = arith.addf %88, %91 : vector<4x1xf32>
    %c0_28 = arith.constant 0 : index
    %c0_29 = arith.constant 0 : index
    %c0_30 = arith.constant 0 : index
    %93 = vector.load %arg6[%c0_28, %c0_29, %c0_30] : memref<1x4x1xf32, #tpu.memory_space<vmem>>, vector<1x4x1xf32>
    %94 = vector.shape_cast %93 : vector<1x4x1xf32> to vector<4x1xf32>
    %95 = vector.shape_cast %92 : vector<4x1xf32> to vector<1x4x1xf32>
    tpu.vector_store %arg6[%c0_28, %c0_29, %c0_30], %95 {strides = array<i32>} : memref<1x4x1xf32, #tpu.memory_space<vmem>>, vector<1x4x1xf32>,
    %c1_i32_31 = arith.constant 1 : i32
    return
  }
  func.func @transform_0(%arg0: i32) -> (i32, i32, i32) {
    %c0_i32 = arith.constant 0 : i32
    %c0_i32_0 = arith.constant 0 : i32
    %c0_i32_1 = arith.constant 0 : i32
    return %arg0, %c0_i32, %c0_i32_0 : i32, i32, i32
  }
  func.func @transform_1(%arg0: i32) -> (i32, i32) {
    %c0_i32 = arith.constant 0 : i32
    %c0_i32_0 = arith.constant 0 : i32
    %c0_i32_1 = arith.constant 0 : i32
    return %c0_i32, %c0_i32_0 : i32, i32
  }
  func.func @transform_2(%arg0: i32) -> (i32, i32, i32) {
    %c0_i32 = arith.constant 0 : i32
    %c0_i32_0 = arith.constant 0 : i32
    %c0_i32_1 = arith.constant 0 : i32
    %c0_i32_2 = arith.constant 0 : i32
    return %c0_i32, %c0_i32_0, %c0_i32_1 : i32, i32, i32
  }
  func.func @transform_3(%arg0: i32) -> (i32, i32, i32) {
    %c0_i32 = arith.constant 0 : i32
    %c0_i32_0 = arith.constant 0 : i32
    %c0_i32_1 = arith.constant 0 : i32
    return %arg0, %c0_i32, %c0_i32_0 : i32, i32, i32
  }
  func.func @transform_4(%arg0: i32) -> (i32, i32, i32) {
    %c0_i32 = arith.constant 0 : i32
    %c0_i32_0 = arith.constant 0 : i32
    %c0_i32_1 = arith.constant 0 : i32
    return %arg0, %c0_i32, %c0_i32_0 : i32, i32, i32
  }
  func.func @transform_5(%arg0: i32) -> (i32, i32, i32) {
    %c0_i32 = arith.constant 0 : i32
    %c0_i32_0 = arith.constant 0 : i32
    %c0_i32_1 = arith.constant 0 : i32
    return %arg0, %c0_i32, %c0_i32_0 : i32, i32, i32
  }
}

</mosaic_0001>

<llo_original>
// kernel: tpu_custom_call.1
$region0: #{tpu_custom_call.1}
  #allocation0 [shape = 'u32[]', space=smem, size = 0x4, offset = 0x4, fixed_abs, tag = 'smem constant byte address 0x4 - core index']
  #allocation1 [shape = 'u32[144,128]{1,0:T(1,128)}', space=vmem, size = 0x12000, scoped, tag = 'internal scratch']
  %s0 = inlined_call_operand.hbm [shape: f32[2,4,256], index: 0, kind: input, shape index: {}]
  %s1 = inlined_call_operand.vmem [shape: bf16[4,36], index: 1, kind: input, shape index: {}]
  %s2 = inlined_call_operand.hbm [shape: f32[9,1,256], index: 2, kind: input, shape index: {}]
  %s3 = inlined_call_operand.hbm [shape: bf16[2,4,256], index: 3, kind: output, shape index: {0}]
  %s4 = inlined_call_operand.vmem [shape: f32[2,4,1], index: 4, kind: output, shape index: {1}]
  %s5 = inlined_call_operand.vmem [shape: f32[2,4,1], index: 5, kind: output, shape index: {2}]
  %6 = xla_tuple %s3, %s4, %s5
  %s7 = sld [smem:[#allocation0]]
  $region69: #{tpu_custom_call.1} parent=0
    _
  %s9 = ssub.s32 1, %s7
  %s10 = scalar_select 0, %s9, %s7
  $region1: #{tpu_custom_call.1} parent=0
    #allocation2 [shape = 'u8[8192]{0}', space=vmem, size = 0x2000, scoped, tag = 'input window, operand 0']
    #allocation3 [shape = 's32[2]{0}', space=sflag, size = 0x8, scoped, tag = 'scoped memory for tpu_custom_call.1']
    #allocation4 [shape = 's32[2]{0}', space=sflag, size = 0x8, scoped, tag = 'scoped memory for tpu_custom_call.1']
    #allocation5 [shape = 'u8[9216]{0}', space=vmem, size = 0x2400, scoped, tag = 'input window, operand 2, single buffered']
    #allocation6 [shape = 's32[1]{0}', space=sflag, size = 0x4, scoped, tag = 'scoped memory for tpu_custom_call.1']
    #allocation7 [shape = 'u8[4096]{0}', space=vmem, size = 0x1000, scoped, tag = 'output window, operand 0']
    %11 = vsyncpa [#allocation3], 0
    %s12 = scalar_lea.sflag [#allocation3], 1
    %13 = vsyncpa %s12, 0
    %14 = vsyncpa [#allocation6], 0
    %15 = vsyncpa [#allocation4], 0
    %s16 = scalar_lea.sflag [#allocation4], 1
    %17 = vsyncpa %s16, 0
    loop: start=0, step=1, limit=4
    $region2: #{tpu_custom_call.1} parent=1 // loop_pre_header
      _
    $region3: #{tpu_custom_call.1} parent=1 // loop_header
      %s19 = sphi 0, %s23
      %p20 = scmp.ge.s32.totalorder %s19, 4
      %s29 = sphi 0, %s31
      %s32 = sphi 0, %s29
      %s33 = sphi 0, %s32
      %s49 = sphi 0, %s33
      %s53 = sphi 0, %s53
      %s55 = sphi 0, %s53
      %s56 = sphi 0, %s55
      %s70 = sphi 0, %s56
      %s74 = sphi 0, %s74
      %s76 = sphi 0, %s74
      %s77 = sphi 0, %s76
      %s91 = sphi 0, %s77
      %s97 = sphi 0, %s99
      %s100 = sphi 0, %s97
      %s101 = sphi 0, %s100
      %s117 = sphi 0, %s101
      %s123 = sphi 0, %s125
      %s126 = sphi 0, %s123
      %s127 = sphi 0, %s126
      %s143 = sphi 0, %s127
      %s149 = sphi 0, %s151
      %s152 = sphi 0, %s149
      %s153 = sphi 0, %s152
      %s169 = sphi 0, %s153
    $region4: #{tpu_custom_call.1} parent=1 // loop_header_branch
      %22 = sbr.rel (%p20) target = $region8
    $region5: #{tpu_custom_call.1} parent=1 // loop_body
      %s24 = ssub.s32 %s19, 1
      %s25 = ssub.s32 %s19, 2
      %s26 = sadd.s32 %s19, 1
      %s27 = ssub.s32 %s19, %s26
      %p28 = scmp.eq.s32.totalorder %s27, 0
      %s30 = sadd.s32 %s29, 1
      %s31 = scalar_select %p28, %s29, %s30
      %p34 = pneg %p28
      %p35 = scmp.eq.s32.totalorder %s19, 1
      %p36 = por %p34, %p35
      %p37 = scmp.ne.s32.totalorder %s29, %s32
      %p38 = scmp.eq.s32.totalorder %s19, 0
      %p39 = por %p37, %p38
      %p40 = scmp.ne.s32.totalorder %s29, %s32
      %p41 = scmp.eq.s32.totalorder %s24, 1
      %p42 = por %p40, %p41
      %p43 = scmp.ne.s32.totalorder %s32, %s33
      %p44 = scmp.eq.s32.totalorder %s24, 0
      %p45 = por %p43, %p44
      %p46 = scmp.ne.s32.totalorder %s32, %s33
      %p47 = scmp.eq.s32.totalorder %s25, 1
      %p48 = por %p46, %p47
      %p50 = scmp.ne.s32.totalorder %s33, %s49
      %p51 = scmp.eq.s32.totalorder %s25, 0
      %p52 = por %p50, %p51
      %s54 = sadd.s32 %s53, 1
      %p57 = scmp.eq.s32.totalorder %s19, 1
      %p58 = scmp.ne.s32.totalorder %s53, %s55
      %p59 = scmp.eq.s32.totalorder %s19, 0
      %p60 = por %p58, %p59
      %p61 = scmp.ne.s32.totalorder %s53, %s55
      %p62 = scmp.eq.s32.totalorder %s24, 1
      %p63 = por %p61, %p62
      %p64 = scmp.ne.s32.totalorder %s55, %s56
      %p65 = scmp.eq.s32.totalorder %s24, 0
      %p66 = por %p64, %p65
      %p67 = scmp.ne.s32.totalorder %s55, %s56
      %p68 = scmp.eq.s32.totalorder %s25, 1
      %p69 = por %p67, %p68
      %p71 = scmp.ne.s32.totalorder %s56, %s70
      %p72 = scmp.eq.s32.totalorder %s25, 0
      %p73 = por %p71, %p72
      %s75 = sadd.s32 %s74, 1
      %p78 = scmp.eq.s32.totalorder %s19, 1
      %p79 = scmp.ne.s32.totalorder %s74, %s76
      %p80 = scmp.eq.s32.totalorder %s19, 0
      %p81 = por %p79, %p80
      %p82 = scmp.ne.s32.totalorder %s74, %s76
      %p83 = scmp.eq.s32.totalorder %s24, 1
      %p84 = por %p82, %p83
      %p85 = scmp.ne.s32.totalorder %s76, %s77
      %p86 = scmp.eq.s32.totalorder %s24, 0
      %p87 = por %p85, %p86
      %p88 = scmp.ne.s32.totalorder %s76, %s77
      %p89 = scmp.eq.s32.totalorder %s25, 1
      %p90 = por %p88, %p89
      %p92 = scmp.ne.s32.totalorder %s77, %s91
      %p93 = scmp.eq.s32.totalorder %s25, 0
      %p94 = por %p92, %p93
      %s95 = ssub.s32 %s19, %s26
      %p96 = scmp.eq.s32.totalorder %s95, 0
      %s98 = sadd.s32 %s97, 1
      %s99 = scalar_select %p96, %s97, %s98
      %p102 = pneg %p96
      %p103 = scmp.eq.s32.totalorder %s19, 1
      %p104 = por %p102, %p103
      %p105 = scmp.ne.s32.totalorder %s97, %s100
      %p106 = scmp.eq.s32.totalorder %s19, 0
      %p107 = por %p105, %p106
      %p108 = scmp.ne.s32.totalorder %s97, %s100
      %p109 = scmp.eq.s32.totalorder %s24, 1
      %p110 = por %p108, %p109
      %p111 = scmp.ne.s32.totalorder %s100, %s101
      %p112 = scmp.eq.s32.totalorder %s24, 0
      %p113 = por %p111, %p112
      %p114 = scmp.ne.s32.totalorder %s100, %s101
      %p115 = scmp.eq.s32.totalorder %s25, 1
      %p116 = por %p114, %p115
      %p118 = scmp.ne.s32.totalorder %s101, %s117
      %p119 = scmp.eq.s32.totalorder %s25, 0
      %p120 = por %p118, %p119
      %s121 = ssub.s32 %s19, %s26
      %p122 = scmp.eq.s32.totalorder %s121, 0
      %s124 = sadd.s32 %s123, 1
      %s125 = scalar_select %p122, %s123, %s124
      %p128 = pneg %p122
      %p129 = scmp.eq.s32.totalorder %s19, 1
      %p130 = por %p128, %p129
      %p131 = scmp.ne.s32.totalorder %s123, %s126
      %p132 = scmp.eq.s32.totalorder %s19, 0
      %p133 = por %p131, %p132
      %p134 = scmp.ne.s32.totalorder %s123, %s126
      %p135 = scmp.eq.s32.totalorder %s24, 1
      %p136 = por %p134, %p135
      %p137 = scmp.ne.s32.totalorder %s126, %s127
      %p138 = scmp.eq.s32.totalorder %s24, 0
      %p139 = por %p137, %p138
      %p140 = scmp.ne.s32.totalorder %s126, %s127
      %p141 = scmp.eq.s32.totalorder %s25, 1
      %p142 = por %p140, %p141
      %p144 = scmp.ne.s32.totalorder %s127, %s143
      %p145 = scmp.eq.s32.totalorder %s25, 0
      %p146 = por %p144, %p145
      %s147 = ssub.s32 %s19, %s26
      %p148 = scmp.eq.s32.totalorder %s147, 0
      %s150 = sadd.s32 %s149, 1
      %s151 = scalar_select %p148, %s149, %s150
      %p154 = pneg %p148
      %p155 = scmp.eq.s32.totalorder %s19, 1
      %p156 = por %p154, %p155
      %p157 = scmp.ne.s32.totalorder %s149, %s152
      %p158 = scmp.eq.s32.totalorder %s19, 0
      %p159 = por %p157, %p158
      %p160 = scmp.ne.s32.totalorder %s149, %s152
      %p161 = scmp.eq.s32.totalorder %s24, 1
      %p162 = por %p160, %p161
      %p163 = scmp.ne.s32.totalorder %s152, %s153
      %p164 = scmp.eq.s32.totalorder %s24, 0
      %p165 = por %p163, %p164
      %p166 = scmp.ne.s32.totalorder %s152, %s153
      %p167 = scmp.eq.s32.totalorder %s25, 1
      %p168 = por %p166, %p167
      %p170 = scmp.ne.s32.totalorder %s153, %s169
      %p171 = scmp.eq.s32.totalorder %s25, 0
      %p172 = por %p170, %p171
      %p173 = scmp.le.s32.totalorder 1, %s19
      %p174 = scmp.lt.s32.totalorder %s19, 3
      %p175 = pnand %p173, %p174
      %p176 = pneg %p175
      // Predicated region
      $region9: #{tpu_custom_call.1} parent=5 // pred_check
        _
      $region10: #{tpu_custom_call.1} parent=5 // pred_check_branch
        %178 = sbr.rel (%p175) target = $region12
      $region11: #{tpu_custom_call.1} parent=5 // pred_region
        %s179 = ssub.s32 %s19, 1
        // Predicated region
        $region13: #{tpu_custom_call.1} parent=11 // pred_check
          %p180 = pneg %p66
        $region14: #{tpu_custom_call.1} parent=11 // pred_check_branch
          %182 = sbr.rel (%p180) target = $region16
        $region15: #{tpu_custom_call.1} parent=11 // pred_region
          _
        $region16: #{tpu_custom_call.1} parent=11 // pred_fallthru
          _
        // Predicated region
        $region17: #{tpu_custom_call.1} parent=11 // pred_check
          %p183 = pneg %p87
        $region18: #{tpu_custom_call.1} parent=11 // pred_check_branch
          %185 = sbr.rel (%p183) target = $region20
        $region19: #{tpu_custom_call.1} parent=11 // pred_region
          %s187 = ssub.s32 288, 288
          %188 = vsyncadd [#allocation6], %s187
          %s189 = sshll.u32 [#allocation5], 4
          %s190 = int_to_ptr.vmem [resolvable:$true] %s189
          %195 = dma.hbm_to_vmem [thread:$0]  %s2, 288, %s190, [#allocation6], 32, 32, 2
        $region20: #{tpu_custom_call.1} parent=11 // pred_fallthru
          _
      $region12: #{tpu_custom_call.1} parent=5 // pred_fallthru
        _
      %p196 = scmp.lt.s32.totalorder %s19, 2
      // Predicated region
      $region21: #{tpu_custom_call.1} parent=5 // pred_check
        %p197 = pneg %p196
      $region22: #{tpu_custom_call.1} parent=5 // pred_check_branch
        %199 = sbr.rel (%p197) target = $region24
      $region23: #{tpu_custom_call.1} parent=5 // pred_region
        // Predicated region
        $region25: #{tpu_custom_call.1} parent=23 // pred_check
          %p200 = pneg %p39
        $region26: #{tpu_custom_call.1} parent=23 // pred_check_branch
          %202 = sbr.rel (%p200) target = $region28
        $region27: #{tpu_custom_call.1} parent=23 // pred_region
          %s203 = sand.u32 %s29, 1
          %s204 = scalar_lea.sflag [#allocation3], %s203
          %s205 = sand.u32 %s29, 1
          %s206 = smul.addr %s205, 8
          %s207 = scalar_lea.vmem [#allocation2], %s206
          %s209 = ssub.s32 128, 128
          %210 = vsyncadd %s204, %s209
          %s211 = smul.addr %s19, 2
          %s212 = smul.addr %s211, 64
          %s213 = scalar_lea.hbm %s0, %s212
          %s215 = sshll.u32 %s207, 4
          %s216 = int_to_ptr.vmem [resolvable:$true] %s215
          %218 = dma.hbm_to_vmem [thread:$0]  %s213, 128, %s216, %s204
        $region28: #{tpu_custom_call.1} parent=23 // pred_fallthru
          _
      $region24: #{tpu_custom_call.1} parent=5 // pred_fallthru
        _
      %p219 = scmp.le.s32.totalorder 1, %s19
      %p220 = scmp.lt.s32.totalorder %s19, 3
      %p221 = pnand %p219, %p220
      %p222 = pneg %p221
      // Predicated region
      $region29: #{tpu_custom_call.1} parent=5 // pred_check
        _
      $region30: #{tpu_custom_call.1} parent=5 // pred_check_branch
        %224 = sbr.rel (%p221) target = $region32
      $region31: #{tpu_custom_call.1} parent=5 // pred_region
        %s225 = ssub.s32 %s19, 1
        %s226 = sand.u32 %s32, 1
        %s227 = scalar_lea.sflag [#allocation3], %s226
        %s228 = sand.u32 %s32, 1
        %s229 = smul.addr %s228, 8
        %s230 = scalar_lea.vmem [#allocation2], %s229
        // Predicated region
        $region33: #{tpu_custom_call.1} parent=31 // pred_check
          %p231 = pneg %p45
        $region34: #{tpu_custom_call.1} parent=31 // pred_check_branch
          %233 = sbr.rel (%p231) target = $region36
        $region35: #{tpu_custom_call.1} parent=31 // pred_region
          %234 = dma.done %s227, 128
        $region36: #{tpu_custom_call.1} parent=31 // pred_fallthru
          _
        // Predicated region
        $region37: #{tpu_custom_call.1} parent=31 // pred_check
          %p235 = pneg %p87
        $region38: #{tpu_custom_call.1} parent=31 // pred_check_branch
          %237 = sbr.rel (%p235) target = $region40
        $region39: #{tpu_custom_call.1} parent=31 // pred_region
          %238 = dma.done [#allocation6], 288
        $region40: #{tpu_custom_call.1} parent=31 // pred_fallthru
          _
        %s239 = sand.u32 %s32, 1
        %s240 = scalar_lea.sflag [#allocation3], %s239
        %s241 = sand.u32 %s32, 1
        %s242 = smul.addr %s241, 8
        %s243 = scalar_lea.vmem [#allocation2], %s242
        %p244 = pneg %p45
        %p245 = pneg %p42
        %p246 = pneg %p66
        %p247 = pneg %p63
        %p248 = pneg %p87
        %p249 = pneg %p84
        %p250 = pneg %p113
        %p251 = pneg %p110
        %s252 = sand.u32 %s100, 1
        %s253 = scalar_lea.sflag [#allocation4], %s252
        %s254 = sand.u32 %s100, 1
        %s255 = smul.addr %s254, 4
        %s256 = scalar_lea.vmem [#allocation7], %s255
        %p257 = pneg %p139
        %p258 = pneg %p136
        %p259 = scmp.lt.s32.totalorder %s24, 1
        %s260 = scalar_select %p259, %s24, 1
        %s261 = smul.addr %s260, 4
        %s262 = scalar_lea.vmem %s4, %s261
        %p263 = pneg %p165
        %p264 = pneg %p162
        %p265 = scmp.lt.s32.totalorder %s24, 1
        %s266 = scalar_select %p265, %s24, 1
        %s267 = smul.addr %s266, 4
        %s268 = scalar_lea.vmem %s5, %s267
        %p269 = scmp.lt.s32.totalorder %s24, 1
        %s270 = scalar_select %p269, %s24, 1
        %s271 = smul.addr %s270, 4
        %s272 = scalar_lea.vmem %s4, %s271
        %p273 = scmp.lt.s32.totalorder %s24, 1
        %s274 = scalar_select %p273, %s24, 1
        %s275 = smul.addr %s274, 4
        %s276 = scalar_lea.vmem %s5, %s275
        %v278 = vld [vmem:[%s1] sm:$0x3]
        %v279 = vld [vmem:[#allocation5] sm:$0x3]
        %v280 = vld [vmem:[#allocation5 + $0x2] sm:$0x3]
        %v281 = vld [vmem:[#allocation5 + $0x4] sm:$0x3]
        %v282 = vld [vmem:[#allocation5 + $0x6] sm:$0x3]
        %v283 = vld [vmem:[#allocation5 + $0xa] sm:$0x3]
        %v284 = vld [vmem:[#allocation5 + $0xc] sm:$0x3]
        %v285 = vld [vmem:[#allocation5 + $0xe] sm:$0x3]
        %v286 = vld [vmem:[#allocation5 + $0x10] sm:$0x3]
        %vm287 = vcmask 3072
        %288 = vst.msk [vmem:[%s272] sm:$0xf] %vm287, 0.0
        %289 = vst.msk [vmem:[%s276] sm:$0xf] %vm287, 0.0
        %v290 = vld [vmem:[%s230] sm:$0xff]
        %v292 = vcombine.high %v290, %v290
        %293 = vrot.lane.b32.xlu0 %v292, 17
        %v294 = vpop.permute.xlu0 %293
        %296 = vrot.lane.b32.xlu0 %v290, 17
        %v297 = vpop.permute.xlu0 %296
        %vm298 = vcmask 138240
        %v299 = vsel %vm298, %v297, %v294
        %v302 = vsel %vm298, %v294, %v297
        %v304 = vlaneseq
        %v305 = vshrl.u32 %v304, 7
        %v306 = vsub.s32 0, %v305
        %v307 = vrot.slane %v279, %v306
        %v308 = vlaneseq
        %v309 = vshrl.u32 %v308, 7
        %v310 = vsub.s32 1, %v309
        %v311 = vrot.slane %v279, %v310
        %v314 = vmul.f32 %v302, %v307
        %v315 = vmul.f32 %v299, %v311
        %316 = vrot.lane.b32.xlu0 %v292, 16
        %v317 = vpop.permute.xlu0 %316
        %319 = vrot.lane.b32.xlu0 %v290, 16
        %v320 = vpop.permute.xlu0 %319
        %vm321 = vcmask 130048
        %v322 = vsel %vm321, %v320, %v317
        %v325 = vsel %vm321, %v317, %v320
        %v327 = vlaneseq
        %v328 = vshrl.u32 %v327, 7
        %v329 = vsub.s32 0, %v328
        %v330 = vrot.slane %v280, %v329
        %v331 = vlaneseq
        %v332 = vshrl.u32 %v331, 7
        %v333 = vsub.s32 1, %v332
        %v334 = vrot.slane %v280, %v333
        %v337 = vmul.f32 %v325, %v330
        %v338 = vmul.f32 %v322, %v334
        %339 = vrot.lane.b32.xlu0 %v292, 15
        %v340 = vpop.permute.xlu0 %339
        %342 = vrot.lane.b32.xlu0 %v290, 15
        %v343 = vpop.permute.xlu0 %342
        %vm344 = vcmask 121856
        %v345 = vsel %vm344, %v343, %v340
        %v348 = vsel %vm344, %v340, %v343
        %v350 = vlaneseq
        %v351 = vshrl.u32 %v350, 7
        %v352 = vsub.s32 0, %v351
        %v353 = vrot.slane %v281, %v352
        %v354 = vlaneseq
        %v355 = vshrl.u32 %v354, 7
        %v356 = vsub.s32 1, %v355
        %v357 = vrot.slane %v281, %v356
        %v360 = vmul.f32 %v348, %v353
        %v361 = vmul.f32 %v345, %v357
        %362 = vrot.lane.b32.xlu0 %v292, 1
        %v363 = vpop.permute.xlu0 %362
        %365 = vrot.lane.b32.xlu0 %v290, 1
        %v366 = vpop.permute.xlu0 %365
        %vm367 = vcmask 7168
        %v368 = vsel %vm367, %v366, %v363
        %v371 = vsel %vm367, %v363, %v366
        %v373 = vlaneseq
        %v374 = vshrl.u32 %v373, 7
        %v375 = vsub.s32 0, %v374
        %v376 = vrot.slane %v282, %v375
        %v377 = vlaneseq
        %v378 = vshrl.u32 %v377, 7
        %v379 = vsub.s32 1, %v378
        %v380 = vrot.slane %v282, %v379
        %v383 = vmul.f32 %v371, %v376
        %v384 = vmul.f32 %v368, %v380
        %385 = vrot.lane.b32.xlu0 %v290, 127
        %v386 = vpop.permute.xlu0 %385
        %387 = vrot.lane.b32.xlu0 %v292, 127
        %v388 = vpop.permute.xlu0 %387
        %vm389 = vcmask 1039360
        %v390 = vsel %vm389, %v386, %v388
        %v394 = vsel %vm389, %v388, %v386
        %v396 = vlaneseq
        %v397 = vshrl.u32 %v396, 7
        %v398 = vsub.s32 0, %v397
        %v399 = vrot.slane %v283, %v398
        %v400 = vlaneseq
        %v401 = vshrl.u32 %v400, 7
        %v402 = vsub.s32 1, %v401
        %v403 = vrot.slane %v283, %v402
        %v406 = vmul.f32 %v390, %v399
        %v407 = vmul.f32 %v394, %v403
        %408 = vrot.lane.b32.xlu0 %v290, 113
        %v409 = vpop.permute.xlu0 %408
        %410 = vrot.lane.b32.xlu0 %v292, 113
        %v411 = vpop.permute.xlu0 %410
        %vm412 = vcmask 924672
        %v413 = vsel %vm412, %v409, %v411
        %v417 = vsel %vm412, %v411, %v409
        %v419 = vlaneseq
        %v420 = vshrl.u32 %v419, 7
        %v421 = vsub.s32 0, %v420
        %v422 = vrot.slane %v284, %v421
        %v423 = vlaneseq
        %v424 = vshrl.u32 %v423, 7
        %v425 = vsub.s32 1, %v424
        %v426 = vrot.slane %v284, %v425
        %v429 = vmul.f32 %v413, %v422
        %v430 = vmul.f32 %v417, %v426
        %431 = vrot.lane.b32.xlu0 %v290, 112
        %v432 = vpop.permute.xlu0 %431
        %433 = vrot.lane.b32.xlu0 %v292, 112
        %v434 = vpop.permute.xlu0 %433
        %vm435 = vcmask 916480
        %v436 = vsel %vm435, %v432, %v434
        %v440 = vsel %vm435, %v434, %v432
        %v442 = vlaneseq
        %v443 = vshrl.u32 %v442, 7
        %v444 = vsub.s32 0, %v443
        %v445 = vrot.slane %v285, %v444
        %v446 = vlaneseq
        %v447 = vshrl.u32 %v446, 7
        %v448 = vsub.s32 1, %v447
        %v449 = vrot.slane %v285, %v448
        %v452 = vmul.f32 %v436, %v445
        %v453 = vmul.f32 %v440, %v449
        %454 = vrot.lane.b32.xlu0 %v290, 111
        %v455 = vpop.permute.xlu0 %454
        %456 = vrot.lane.b32.xlu0 %v292, 111
        %v457 = vpop.permute.xlu0 %456
        %vm458 = vcmask 908288
        %v459 = vsel %vm458, %v455, %v457
        %v463 = vsel %vm458, %v457, %v455
        %v465 = vlaneseq
        %v466 = vshrl.u32 %v465, 7
        %v467 = vsub.s32 0, %v466
        %v468 = vrot.slane %v286, %v467
        %v469 = vlaneseq
        %v470 = vshrl.u32 %v469, 7
        %v471 = vsub.s32 1, %v470
        %v472 = vrot.slane %v286, %v471
        %v475 = vmul.f32 %v459, %v468
        %v476 = vmul.f32 %v463, %v472
        %v479 = vrot.slane %v337, 4
        %v480 = vrot.slane %v338, 4
        %v485 = vrot.slane %v383, 4
        %v486 = vrot.slane %v384, 4
        %v492 = vrot.slane %v406, 4
        %v493 = vrot.slane %v407, 4
        %v498 = vrot.slane %v452, 4
        %v499 = vrot.slane %v453, 4
        %vm502 = vcmask 1043456
        %v503 = vsel %vm502, %v314, %v479
        %v504 = vsel %vm502, %v315, %v480
        %v505 = vsel %vm502, %v360, %v485
        %v506 = vsel %vm502, %v361, %v486
        %v507 = vsel %vm502, %v290, %v492
        %v508 = vsel %vm502, %v292, %v493
        %v509 = vsel %vm502, %v429, %v498
        %v510 = vsel %vm502, %v430, %v499
        %v511 = vpack.c.bf16 %v505, %v503
        %v512 = vpack.c.bf16 %v506, %v504
        %v513 = vpack.c.bf16 %v509, %v507
        %v514 = vpack.c.bf16 %v510, %v508
        %v515 = vpack.c.bf16 %v475, %v475
        %v516 = vpack.c.bf16 %v476, %v476
        %vm517 = vcmask 293888
        %v519 = vsel %vm517, %v278, 0
        %vm521 = vcmask 1041408
        %v523 = vsel %vm521, %v515, 0
        %v526 = vsel %vm521, %v516, 0
        %528 = vmatprep.subr.bf16.mxu0 %v512
        %529 = vmatpush1.bf16.msra.mxu0 %v511
        %530 = vmatprep.subr.bf16.mxu0 %v514
        %531 = vmatpush1.bf16.msra.mxu0 %v513
        %532 = vmatprep.subr.bf16.mxu0 %v526
        %533 = vmatpush1.bf16.msra.mxu0 %v523
        %534 = vmatprep.subr.bf16.mxu0 0
        %535 = vmatpush1.bf16.msra.mxu0 0
        %536 = vmatprep.subr.bf16.mxu0 0
        %537 = vmatpush1.bf16.msra.mxu0 0
        %538 = vmatprep.subr.bf16.mxu0 0
        %539 = vmatpush1.bf16.msra.mxu0 0
        %540 = vmatprep.subr.bf16.mxu0 0
        %541 = vmatpush1.bf16.msra.mxu0 0
        %542 = vmatprep.subr.bf16.mxu0 0
        %543 = vmatpush1.bf16.msra.mxu0 0
        %544 = vmatprep.subr.bf16.mxu0 0
        %545 = vmatpush1.bf16.msra.mxu0 0
        %546 = vmatprep.subr.bf16.mxu0 0
        %547 = vmatpush1.bf16.msra.mxu0 0
        %548 = vmatprep.subr.bf16.mxu0 0
        %549 = vmatpush1.bf16.msra.mxu0 0
        %550 = vmatprep.subr.bf16.mxu0 0
        %551 = vmatpush1.bf16.msra.mxu0 0
        %552 = vmatprep.subr.bf16.mxu0 0
        %553 = vmatpush1.bf16.msra.mxu0 0
        %554 = vmatprep.subr.bf16.mxu0 0
        %555 = vmatpush1.bf16.msra.mxu0 0
        %556 = vmatprep.subr.bf16.mxu0 0
        %557 = vmatpush1.bf16.msra.mxu0 0
        %558 = vmatprep.subr.bf16.mxu0 0
        %559 = vmatpush1.bf16.msra.mxu0 0
        %560 = vmatprep.mubr.bf16.mxu0 0
        %561 = vmatmul.mubr.bf16.gmra.mrb[0].mxu0 %v519
        %v562 = vpop.f32.mrb[0].mxu0
        %v563 = vadd.f32 0.0, %v562
        %v564 = vpop.f32.mrb[0].mxu0
        %v565 = vadd.f32 0.0, %v564
        %v566 = vpop.f32.mrb[0].mxu0
        %v567 = vpop.f32.mrb[0].mxu0
        %568 = vdwg.mxu0
        %v569 = vpack.c.bf16 %v563, %v563
        %v570 = vpack.c.bf16 %v565, %v565
        %v573 = vcombine.low %v569, %v570
        %v575 = vunpack.c.l.s4 1983009808
        %v576 = vunpack.c.0.s8 %v575
        %v577 = vlaneseq
        %v578 = vshrl.u32 %v577, 7
        %v579 = vsub.s32 %v576, %v578
        %v580 = vrot.slane %v573, %v579
        %582 = vst [vmem:[%s256] sm:$0xf] %v580
        %v583 = vld [vmem:[%s272] sm:$0xf]
        %v584 = vsel %vm502, %v563, 0.0
        %v585 = vsel %vm502, %v565, 0.0
        %v586 = vadd.f32 %v584, %v585
        %587 = vadd.xlane.f32.xlu0 %v586
        %v588 = vpop.xlane.xlu0 %587
        %v589 = vadd.f32 %v583, %v588
        %590 = vst.msk [vmem:[%s272] sm:$0xf] %vm287, %v589
        %v591 = vld [vmem:[%s276] sm:$0xf]
        %v592 = vmul.f32 %v563, %v563
        %v593 = vmul.f32 %v565, %v565
        %v594 = vsel %vm502, %v592, 0.0
        %v595 = vsel %vm502, %v593, 0.0
        %v596 = vadd.f32 %v594, %v595
        %597 = vadd.xlane.f32.xlu0 %v596
        %v598 = vpop.xlane.xlu0 %597
        %v599 = vadd.f32 %v591, %v598
        %600 = vst.msk [vmem:[%s276] sm:$0xf] %vm287, %v599
        %s601 = sand.u32 %s100, 1
        %s602 = scalar_lea.sflag [#allocation4], %s601
        %s603 = sand.u32 %s100, 1
        %s604 = smul.addr %s603, 4
        %s605 = scalar_lea.vmem [#allocation7], %s604
        %p606 = scmp.lt.s32.totalorder %s24, 1
        %s607 = scalar_select %p606, %s24, 1
        %s608 = smul.addr %s607, 4
        %s609 = scalar_lea.vmem %s4, %s608
        %p610 = scmp.lt.s32.totalorder %s24, 1
        %s611 = scalar_select %p610, %s24, 1
        %s612 = smul.addr %s611, 4
        %s613 = scalar_lea.vmem %s5, %s612
        // Predicated region
        $region41: #{tpu_custom_call.1} parent=31 // pred_check
          %p614 = pneg %p110
        $region42: #{tpu_custom_call.1} parent=31 // pred_check_branch
          %616 = sbr.rel (%p614) target = $region44
        $region43: #{tpu_custom_call.1} parent=31 // pred_region
          %s618 = ssub.s32 64, 64
          %619 = vsyncadd %s602, %s618
          %s620 = smul.addr %s24, 2
          %s621 = smul.addr %s620, 32
          %s622 = scalar_lea.hbm %s3, %s621
          %s624 = sshll.u32 %s605, 4
          %s625 = int_to_ptr.vmem [resolvable:$true] %s624
          %627 = dma.vmem_to_hbm [thread:$0]  %s625, 64, %s622, %s602
        $region44: #{tpu_custom_call.1} parent=31 // pred_fallthru
          _
        // Predicated region
        $region45: #{tpu_custom_call.1} parent=31 // pred_check
          %p628 = pneg %p136
        $region46: #{tpu_custom_call.1} parent=31 // pred_check_branch
          %630 = sbr.rel (%p628) target = $region48
        $region47: #{tpu_custom_call.1} parent=31 // pred_region
          _
        $region48: #{tpu_custom_call.1} parent=31 // pred_fallthru
          _
        // Predicated region
        $region49: #{tpu_custom_call.1} parent=31 // pred_check
          %p631 = pneg %p162
        $region50: #{tpu_custom_call.1} parent=31 // pred_check_branch
          %633 = sbr.rel (%p631) target = $region52
        $region51: #{tpu_custom_call.1} parent=31 // pred_region
          _
        $region52: #{tpu_custom_call.1} parent=31 // pred_fallthru
          _
      $region32: #{tpu_custom_call.1} parent=5 // pred_fallthru
        _
      %p634 = scmp.le.s32.totalorder 2, %s19
      // Predicated region
      $region53: #{tpu_custom_call.1} parent=5 // pred_check
        %p635 = pneg %p634
      $region54: #{tpu_custom_call.1} parent=5 // pred_check_branch
        %637 = sbr.rel (%p635) target = $region56
      $region55: #{tpu_custom_call.1} parent=5 // pred_region
        %s638 = ssub.s32 %s19, 2
        // Predicated region
        $region57: #{tpu_custom_call.1} parent=55 // pred_check
          %p639 = pneg %p116
        $region58: #{tpu_custom_call.1} parent=55 // pred_check_branch
          %641 = sbr.rel (%p639) target = $region60
        $region59: #{tpu_custom_call.1} parent=55 // pred_region
          %s642 = sand.u32 %s101, 1
          %s643 = scalar_lea.sflag [#allocation4], %s642
          %s644 = sand.u32 %s101, 1
          %s645 = smul.addr %s644, 4
          %s646 = scalar_lea.vmem [#allocation7], %s645
          %647 = dma.done %s643, 64
        $region60: #{tpu_custom_call.1} parent=55 // pred_fallthru
          _
        // Predicated region
        $region61: #{tpu_custom_call.1} parent=55 // pred_check
          %p648 = pneg %p142
        $region62: #{tpu_custom_call.1} parent=55 // pred_check_branch
          %650 = sbr.rel (%p648) target = $region64
        $region63: #{tpu_custom_call.1} parent=55 // pred_region
          %p651 = scmp.lt.s32.totalorder %s25, 1
          %s652 = scalar_select %p651, %s25, 1
          %s653 = smul.addr %s652, 4
          %s654 = scalar_lea.vmem %s4, %s653
        $region64: #{tpu_custom_call.1} parent=55 // pred_fallthru
          _
        // Predicated region
        $region65: #{tpu_custom_call.1} parent=55 // pred_check
          %p655 = pneg %p168
        $region66: #{tpu_custom_call.1} parent=55 // pred_check_branch
          %657 = sbr.rel (%p655) target = $region68
        $region67: #{tpu_custom_call.1} parent=55 // pred_region
          %p658 = scmp.lt.s32.totalorder %s25, 1
          %s659 = scalar_select %p658, %s25, 1
          %s660 = smul.addr %s659, 4
          %s661 = scalar_lea.vmem %s5, %s660
        $region68: #{tpu_custom_call.1} parent=55 // pred_fallthru
          _
      $region56: #{tpu_custom_call.1} parent=5 // pred_fallthru
        _
    $region6: #{tpu_custom_call.1} parent=1 // loop_footer
      %s23 = sadd.s32 1, %s19
    $region7: #{tpu_custom_call.1} parent=1 // loop_footer_branch
      %18 = sbr.rel target = $region3
    $region8: #{tpu_custom_call.1} parent=1 // loop_exit
      _
    %662 = vsyncpa [#allocation3], 1
    %s663 = scalar_lea.sflag [#allocation3], 1
    %664 = vsyncpa %s663, 1
    %665 = vsyncpa [#allocation6], 1
    %666 = vsyncpa [#allocation4], 1
    %s667 = scalar_lea.sflag [#allocation4], 1
    %668 = vsyncpa %s667, 1

</llo_original>
